<compile_context>
chip_gen: v7x
topology: tpu7x:2x2x1
jax: 0.10.0
libtpu: 0.0.40
codegen_flags: <defaults>
</compile_context>

<pallas_src>
import functools

import numpy as np
import jax
import jax.numpy as jnp
from jax.experimental import pallas as pl
from jax.experimental.pallas import tpu as pltpu


# ---------------------------------------------------------------------------
# Kernel: whole critic forward for one batch tile.
# Refs: sa (state||action), w1, b1, w2h, w2a, b2, w3, b3, w4row, b4 -> out (tb, 1)
# ---------------------------------------------------------------------------
def critic_kernel(sa_ref, w1_ref, b1_ref, w2h_ref, w2a_ref, b2_ref,
                  w3_ref, b3_ref, w4_ref, b4_ref, o_ref,
                  *, state_dim, action_dim):
    f32 = jnp.float32
    bf16 = jnp.bfloat16

    def lrelu(x):                                    # leaky_relu slope 0.01, f32 on VPU
        return jnp.maximum(x, 0.01 * x)

    sa = sa_ref[...]                                 # (tb, S+A) f32
    s_bf = sa[:, :state_dim].astype(bf16)            # (tb, S)

    # fc1 + leaky_relu (MXU, bf16 in / f32 acc)
    h1 = jnp.dot(s_bf, w1_ref[...], preferred_element_type=f32) + b1_ref[...]
    h1 = lrelu(h1)                                   # (tb, 256) f32

    # fc2(cat(h1, action)) == h1 @ W2h (MXU)  +  action @ W2a (VPU, K=A tiny) + b2
    h2 = jnp.dot(h1.astype(bf16), w2h_ref[...], preferred_element_type=f32) + b2_ref[...]
    w2a = w2a_ref[...]                               # (A, 256) f32
    for j in range(action_dim):                      # unrolled: A is small & static
        a_col = sa[:, state_dim + j:state_dim + j + 1]          # (tb, 1) f32
        h2 = h2 + a_col * w2a[j:j + 1, :]                        # broadcast MAC on VPU
    h2 = lrelu(h2)                                   # (tb, 256) f32

    # fc3 + leaky_relu (MXU)
    h3 = jnp.dot(h2.astype(bf16), w3_ref[...], preferred_element_type=f32) + b3_ref[...]
    h3 = lrelu(h3)                                   # (tb, 128) f32

    # fc4 (128 -> 1): VPU multiply + XLU lane-reduce; no MXU, no output padding.
    q = jnp.sum(h3 * w4_ref[...], axis=-1, keepdims=True) + b4_ref[...]   # (tb, 1) f32
    o_ref[...] = q.astype(o_ref.dtype)


# ---------------------------------------------------------------------------
# Wrapper
# ---------------------------------------------------------------------------
def _choose_tile_b(B):
    """Rows per grid step: <=1024, multiple of 8, >=2 grid steps when feasible."""
    if B <= 16:
        return max(8, ((B + 7) // 8) * 8)
    half = (B + 1) // 2                              # aim for >=2 steps (v7x: 2 TCs)
    tb = min(1024, half)
    return ((tb + 7) // 8) * 8


def critic_forward(state, action, kparams, *, tile_b=None):
    """Q-values (B, 1). kparams = prepare_kernel_params(init_critic_params(...))."""
    B, S = state.shape
    A = action.shape[1]
    w1, b1, w2h, w2a, b2, w3, b3, w4r, b4 = kparams

    if tile_b is None:
        tile_b = _choose_tile_b(B)
    tile_b = max(8, ((tile_b + 7) // 8) * 8)
    grid_b = pl.cdiv(B, tile_b)
    B_pad = grid_b * tile_b

    # Single (B, S+A) f32 operand: one batch-tiled input DMA per grid step.
    sa = jnp.concatenate([state, action], axis=1).astype(jnp.float32)
    if B_pad != B:
        sa = jnp.pad(sa, ((0, B_pad - B), (0, 0)))

    kern = functools.partial(critic_kernel, state_dim=S, action_dim=A)
    const = lambda i: (0, 0)

    flops = int(2 * B_pad * (S * 256 + 256 * 256 + A * 256 + 256 * 128 + 128))
    weight_bytes = sum(int(np.prod(w.shape)) * int(jnp.dtype(w.dtype).itemsize)
                       for w in (w1, b1, w2h, w2a, b2, w3, b3, w4r, b4))
    bytes_accessed = int(sa.size) * 4 + int(B_pad) * 4 + weight_bytes

    q = pl.pallas_call(
        kern,
        out_shape=jax.ShapeDtypeStruct((B_pad, 1), jnp.float32),
        grid=(grid_b,),
        in_specs=[
            pl.BlockSpec((tile_b, S + A), lambda i: (i, 0)),     # batch-tiled input
            pl.BlockSpec(w1.shape, const),                       # resident weights
            pl.BlockSpec(b1.shape, const),
            pl.BlockSpec(w2h.shape, const),
            pl.BlockSpec(w2a.shape, const),
            pl.BlockSpec(b2.shape, const),
            pl.BlockSpec(w3.shape, const),
            pl.BlockSpec(b3.shape, const),
            pl.BlockSpec(w4r.shape, const),
            pl.BlockSpec(b4.shape, const),
        ],
        out_specs=pl.BlockSpec((tile_b, 1), lambda i: (i, 0)),
        compiler_params=pltpu.CompilerParams(
            dimension_semantics=("parallel",)),
        cost_estimate=pl.CostEstimate(flops=flops, transcendentals=0,
                                      bytes_accessed=bytes_accessed),
    )(sa, w1, b1, w2h, w2a, b2, w3, b3, w4r, b4)

    return q[:B]                                      # drop batch padding


# ---------------------------------------------------------------------------
# Parameter init mirroring CriticNetwork.__init__ / init_weights / hidden_unit
# (weights stored transposed: (in_features, out_features); biases (1, out)).
# init_weights overrides WEIGHTS with U(+-1/sqrt(out_features)) (weight.size(0)
# in PyTorch is out_features); biases keep the nn.Linear default
# U(+-1/sqrt(in_features)).
# ---------------------------------------------------------------------------
def init_critic_params(key, state_space, action_space):
    ks = jax.random.split(key, 8)

    def u(k, shape, lim):
        return jax.random.uniform(k, shape, jnp.float32, -lim, lim)

    w1 = u(ks[0], (state_space, 256), 1.0 / np.sqrt(256))
    b1 = u(ks[1], (1, 256), 1.0 / np.sqrt(state_space))
    w2 = u(ks[2], (256 + action_space, 256), 1.0 / np.sqrt(256))
    b2 = u(ks[3], (1, 256), 1.0 / np.sqrt(256 + action_space))
    w3 = u(ks[4], (256, 128), 1.0 / np.sqrt(128))
    b3 = u(ks[5], (1, 128), 1.0 / np.sqrt(256))
    w4 = u(ks[6], (128, 1), 0.003)
    b4 = u(ks[7], (1, 1), 1.0 / np.sqrt(128))
    return dict(w1=w1, b1=b1, w2=w2, b2=b2, w3=w3, b3=b3, w4=w4, b4=b4)


def prepare_kernel_params(p):
    """Split fc2 (concat-free); fc4 kept as a (1, 128) f32 row (VPU/XLU path);
    MXU weights cast to bf16, VPU-path tensors stay f32."""
    bf16 = jnp.bfloat16
    h1 = p["w1"].shape[1]                            # 256
    w2h = p["w2"][:h1]                               # (256, 256) -> MXU
    w2a = p["w2"][h1:]                               # (A, 256)   -> VPU (f32)
    w4_row = jnp.transpose(p["w4"])                  # (1, 128)   -> VPU (f32)
    return (p["w1"].astype(bf16), p["b1"],
            w2h.astype(bf16), w2a, p["b2"],
            p["w3"].astype(bf16), p["b3"],
            w4_row, p["b4"])


def critic_reference(state, action, p):
    """Pure-JAX f32 reference of CriticNetwork.forward."""
    lrelu = lambda x: jnp.maximum(x, 0.01 * x)
    h1 = lrelu(state @ p["w1"] + p["b1"])
    x = jnp.concatenate([h1, action], axis=1)
    h2 = lrelu(x @ p["w2"] + p["b2"])
    h3 = lrelu(h2 @ p["w3"] + p["b3"])
    return h3 @ p["w4"] + p["b4"]


if __name__ == "__main__":
    key = jax.random.PRNGKey(0)
    kx, ka, kp, kx2, ka2, kx3, ka3 = jax.random.split(key, 7)

    state_space, action_space = 8, 4
    params = init_critic_params(kp, state_space, action_space)
    kparams = prepare_kernel_params(params)

    # ---- small batch (grid of 1 step) ----
    B = 2
    state = jax.random.normal(kx, (B, state_space), jnp.float32)
    action = jax.random.uniform(ka, (B, action_space), jnp.float32, -1.0, 1.0)
    q = jax.block_until_ready(critic_forward(state, action, kparams))
    ref = critic_reference(state, action, params)
    assert q.shape == (B, 1)
    np.testing.assert_allclose(np.asarray(q), np.asarray(ref), rtol=5e-2, atol=1e-2)

    # ---- larger batch: auto tile_b -> 2 parallel grid steps ----
    B2 = 256
    state2 = jax.random.normal(kx2, (B2, state_space), jnp.float32)
    action2 = jax.random.uniform(ka2, (B2, action_space), jnp.float32, -1.0, 1.0)
    q2 = jax.block_until_ready(critic_forward(state2, action2, kparams))
    ref2 = critic_reference(state2, action2, params)
    assert q2.shape == (B2, 1)
    np.testing.assert_allclose(np.asarray(q2), np.asarray(ref2), rtol=5e-2, atol=1e-2)

    # ---- ragged batch: exercises batch padding + slice-back ----
    B3 = 100
    state3 = jax.random.normal(kx3, (B3, state_space), jnp.float32)
    action3 = jax.random.uniform(ka3, (B3, action_space), jnp.float32, -1.0, 1.0)
    q3 = jax.block_until_ready(critic_forward(state3, action3, kparams))
    ref3 = critic_reference(state3, action3, params)
    assert q3.shape == (B3, 1)
    np.testing.assert_allclose(np.asarray(q3), np.asarray(ref3), rtol=5e-2, atol=1e-2)

    print("KERNEL_OK")
</pallas_src>

<mosaic_0001>
module attributes {stable_mosaic.version = 11 : i64} {
  func.func @critic_kernel(%arg0: i32, %arg1: memref<8x12xf32, #tpu.memory_space<vmem>>, %arg2: memref<8x256xbf16, #tpu.memory_space<vmem>>, %arg3: memref<1x256xf32, #tpu.memory_space<vmem>>, %arg4: memref<256x256xbf16, #tpu.memory_space<vmem>>, %arg5: memref<4x256xf32, #tpu.memory_space<vmem>>, %arg6: memref<1x256xf32, #tpu.memory_space<vmem>>, %arg7: memref<256x128xbf16, #tpu.memory_space<vmem>>, %arg8: memref<1x128xf32, #tpu.memory_space<vmem>>, %arg9: memref<1x128xf32, #tpu.memory_space<vmem>>, %arg10: memref<1x1xf32, #tpu.memory_space<vmem>>, %arg11: memref<8x1xf32, #tpu.memory_space<vmem>>) attributes {dimension_semantics = [#tpu.dimension_semantics<parallel>], iteration_bounds = array<i64: 1>, scalar_prefetch = 0 : i64, scratch_operands = 0 : i64, tpu.core_type = #tpu.core_type<tc>, window_params = [{transform_indices = @transform_0, window_bounds = array<i64: 8, 12>}, {pipeline_mode = #tpu.pipeline_mode<synchronous>, transform_indices = @transform_1, window_bounds = array<i64: 8, 256>}, {pipeline_mode = #tpu.pipeline_mode<synchronous>, transform_indices = @transform_2, window_bounds = array<i64: 1, 256>}, {pipeline_mode = #tpu.pipeline_mode<synchronous>, transform_indices = @transform_3, window_bounds = array<i64: 256, 256>}, {pipeline_mode = #tpu.pipeline_mode<synchronous>, transform_indices = @transform_4, window_bounds = array<i64: 4, 256>}, {pipeline_mode = #tpu.pipeline_mode<synchronous>, transform_indices = @transform_5, window_bounds = array<i64: 1, 256>}, {pipeline_mode = #tpu.pipeline_mode<synchronous>, transform_indices = @transform_6, window_bounds = array<i64: 256, 128>}, {pipeline_mode = #tpu.pipeline_mode<synchronous>, transform_indices = @transform_7, window_bounds = array<i64: 1, 128>}, {pipeline_mode = #tpu.pipeline_mode<synchronous>, transform_indices = @transform_8, window_bounds = array<i64: 1, 128>}, {pipeline_mode = #tpu.pipeline_mode<synchronous>, transform_indices = @transform_9, window_bounds = array<i64: 1, 1>}, {transform_indices = @transform_10, window_bounds = array<i64: 8, 1>}]} {
    %c0 = arith.constant 0 : index
    %c0_0 = arith.constant 0 : index
    %0 = vector.load %arg1[%c0, %c0_0] : memref<8x12xf32, #tpu.memory_space<vmem>>, vector<8x12xf32>
    %1 = vector.extract_strided_slice %0 {offsets = [0, 0], sizes = [8, 8], strides = [1, 1]} : vector<8x12xf32> to vector<8x8xf32>
    %2 = arith.truncf %1 : vector<8x8xf32> to vector<8x8xbf16>
    %c0_1 = arith.constant 0 : index
    %c0_2 = arith.constant 0 : index
    %3 = vector.load %arg2[%c0_1, %c0_2] : memref<8x256xbf16, #tpu.memory_space<vmem>>, vector<8x256xbf16>
    %cst = arith.constant dense<0.000000e+00> : vector<8x256xf32>
    %4 = tpu.matmul %2, %3, %cst {dimension_numbers = #tpu.dot_dimension_numbers<[1], [0], [0], [1], [0, 0, 1, 1], [], []>} : vector<8x8xbf16>, vector<8x256xbf16>, vector<8x256xf32> -> vector<8x256xf32>
    %c0_3 = arith.constant 0 : index
    %c0_4 = arith.constant 0 : index
    %5 = vector.load %arg3[%c0_3, %c0_4] : memref<1x256xf32, #tpu.memory_space<vmem>>, vector<1x256xf32>
    %6 = vector.broadcast %5 : vector<1x256xf32> to vector<8x256xf32>
    %7 = arith.addf %4, %6 : vector<8x256xf32>
    %cst_5 = arith.constant 0.00999999977 : f32
    %8 = vector.broadcast %cst_5 : f32 to vector<8x256xf32>
    %9 = arith.mulf %8, %7 : vector<8x256xf32>
    %10 = arith.maximumf %7, %9 : vector<8x256xf32>
    %11 = arith.truncf %10 : vector<8x256xf32> to vector<8x256xbf16>
    %c0_6 = arith.constant 0 : index
    %c0_7 = arith.constant 0 : index
    %12 = vector.load %arg4[%c0_6, %c0_7] : memref<256x256xbf16, #tpu.memory_space<vmem>>, vector<256x256xbf16>
    %cst_8 = arith.constant dense<0.000000e+00> : vector<8x256xf32>
    %13 = tpu.matmul %11, %12, %cst_8 {dimension_numbers = #tpu.dot_dimension_numbers<[1], [0], [0], [1], [0, 0, 1, 1], [], []>} : vector<8x256xbf16>, vector<256x256xbf16>, vector<8x256xf32> -> vector<8x256xf32>
    %c0_9 = arith.constant 0 : index
    %c0_10 = arith.constant 0 : index
    %14 = vector.load %arg6[%c0_9, %c0_10] : memref<1x256xf32, #tpu.memory_space<vmem>>, vector<1x256xf32>
    %15 = vector.broadcast %14 : vector<1x256xf32> to vector<8x256xf32>
    %16 = arith.addf %13, %15 : vector<8x256xf32>
    %c0_11 = arith.constant 0 : index
    %c0_12 = arith.constant 0 : index
    %17 = vector.load %arg5[%c0_11, %c0_12] : memref<4x256xf32, #tpu.memory_space<vmem>>, vector<4x256xf32>
    %18 = vector.extract_strided_slice %0 {offsets = [0, 8], sizes = [8, 1], strides = [1, 1]} : vector<8x12xf32> to vector<8x1xf32>
    %19 = vector.extract_strided_slice %17 {offsets = [0, 0], sizes = [1, 256], strides = [1, 1]} : vector<4x256xf32> to vector<1x256xf32>
    %20 = vector.broadcast %18 : vector<8x1xf32> to vector<8x256xf32>
    %21 = vector.broadcast %19 : vector<1x256xf32> to vector<8x256xf32>
    %22 = arith.mulf %20, %21 : vector<8x256xf32>
    %23 = arith.addf %16, %22 : vector<8x256xf32>
    %24 = vector.extract_strided_slice %0 {offsets = [0, 9], sizes = [8, 1], strides = [1, 1]} : vector<8x12xf32> to vector<8x1xf32>
    %25 = vector.extract_strided_slice %17 {offsets = [1, 0], sizes = [1, 256], strides = [1, 1]} : vector<4x256xf32> to vector<1x256xf32>
    %26 = vector.broadcast %24 : vector<8x1xf32> to vector<8x256xf32>
    %27 = vector.broadcast %25 : vector<1x256xf32> to vector<8x256xf32>
    %28 = arith.mulf %26, %27 : vector<8x256xf32>
    %29 = arith.addf %23, %28 : vector<8x256xf32>
    %30 = vector.extract_strided_slice %0 {offsets = [0, 10], sizes = [8, 1], strides = [1, 1]} : vector<8x12xf32> to vector<8x1xf32>
    %31 = vector.extract_strided_slice %17 {offsets = [2, 0], sizes = [1, 256], strides = [1, 1]} : vector<4x256xf32> to vector<1x256xf32>
    %32 = vector.broadcast %30 : vector<8x1xf32> to vector<8x256xf32>
    %33 = vector.broadcast %31 : vector<1x256xf32> to vector<8x256xf32>
    %34 = arith.mulf %32, %33 : vector<8x256xf32>
    %35 = arith.addf %29, %34 : vector<8x256xf32>
    %36 = vector.extract_strided_slice %0 {offsets = [0, 11], sizes = [8, 1], strides = [1, 1]} : vector<8x12xf32> to vector<8x1xf32>
    %37 = vector.extract_strided_slice %17 {offsets = [3, 0], sizes = [1, 256], strides = [1, 1]} : vector<4x256xf32> to vector<1x256xf32>
    %38 = vector.broadcast %36 : vector<8x1xf32> to vector<8x256xf32>
    %39 = vector.broadcast %37 : vector<1x256xf32> to vector<8x256xf32>
    %40 = arith.mulf %38, %39 : vector<8x256xf32>
    %41 = arith.addf %35, %40 : vector<8x256xf32>
    %cst_13 = arith.constant 0.00999999977 : f32
    %42 = vector.broadcast %cst_13 : f32 to vector<8x256xf32>
    %43 = arith.mulf %42, %41 : vector<8x256xf32>
    %44 = arith.maximumf %41, %43 : vector<8x256xf32>
    %45 = arith.truncf %44 : vector<8x256xf32> to vector<8x256xbf16>
    %c0_14 = arith.constant 0 : index
    %c0_15 = arith.constant 0 : index
    %46 = vector.load %arg7[%c0_14, %c0_15] : memref<256x128xbf16, #tpu.memory_space<vmem>>, vector<256x128xbf16>
    %cst_16 = arith.constant dense<0.000000e+00> : vector<8x128xf32>
    %47 = tpu.matmul %45, %46, %cst_16 {dimension_numbers = #tpu.dot_dimension_numbers<[1], [0], [0], [1], [0, 0, 1, 1], [], []>} : vector<8x256xbf16>, vector<256x128xbf16>, vector<8x128xf32> -> vector<8x128xf32>
    %c0_17 = arith.constant 0 : index
    %c0_18 = arith.constant 0 : index
    %48 = vector.load %arg8[%c0_17, %c0_18] : memref<1x128xf32, #tpu.memory_space<vmem>>, vector<1x128xf32>
    %49 = vector.broadcast %48 : vector<1x128xf32> to vector<8x128xf32>
    %50 = arith.addf %47, %49 : vector<8x128xf32>
    %cst_19 = arith.constant 0.00999999977 : f32
    %51 = vector.broadcast %cst_19 : f32 to vector<8x128xf32>
    %52 = arith.mulf %51, %50 : vector<8x128xf32>
    %53 = arith.maximumf %50, %52 : vector<8x128xf32>
    %c0_20 = arith.constant 0 : index
    %c0_21 = arith.constant 0 : index
    %54 = vector.load %arg9[%c0_20, %c0_21] : memref<1x128xf32, #tpu.memory_space<vmem>>, vector<1x128xf32>
    %55 = vector.broadcast %54 : vector<1x128xf32> to vector<8x128xf32>
    %56 = arith.mulf %53, %55 : vector<8x128xf32>
    %cst_22 = arith.constant dense<0.000000e+00> : vector<8xf32>
    %57 = vector.multi_reduction <add>, %56, %cst_22 [1] : vector<8x128xf32> to vector<8xf32>
    %58 = vector.shape_cast %57 : vector<8xf32> to vector<8x1xf32>
    %c0_23 = arith.constant 0 : index
    %c0_24 = arith.constant 0 : index
    %59 = vector.load %arg10[%c0_23, %c0_24] : memref<1x1xf32, #tpu.memory_space<vmem>>, vector<1x1xf32>
    %60 = vector.broadcast %59 : vector<1x1xf32> to vector<8x1xf32>
    %61 = arith.addf %58, %60 : vector<8x1xf32>
    %c0_25 = arith.constant 0 : index
    %c0_26 = arith.constant 0 : index
    %62 = vector.load %arg11[%c0_25, %c0_26] : memref<8x1xf32, #tpu.memory_space<vmem>>, vector<8x1xf32>
    tpu.vector_store %arg11[%c0_25, %c0_26], %61 {strides = array<i32>} : memref<8x1xf32, #tpu.memory_space<vmem>>, vector<8x1xf32>,
    return
  }
  func.func @transform_0(%arg0: i32) -> (i32, i32) {
    %c0_i32 = arith.constant 0 : i32
    %c0_i32_0 = arith.constant 0 : i32
    return %arg0, %c0_i32 : i32, i32
  }
  func.func @transform_1(%arg0: i32) -> (i32, i32) {
    %c0_i32 = arith.constant 0 : i32
    %c0_i32_0 = arith.constant 0 : i32
    %c0_i32_1 = arith.constant 0 : i32
    return %c0_i32, %c0_i32_0 : i32, i32
  }
  func.func @transform_2(%arg0: i32) -> (i32, i32) {
    %c0_i32 = arith.constant 0 : i32
    %c0_i32_0 = arith.constant 0 : i32
    %c0_i32_1 = arith.constant 0 : i32
    return %c0_i32, %c0_i32_0 : i32, i32
  }
  func.func @transform_3(%arg0: i32) -> (i32, i32) {
    %c0_i32 = arith.constant 0 : i32
    %c0_i32_0 = arith.constant 0 : i32
    %c0_i32_1 = arith.constant 0 : i32
    return %c0_i32, %c0_i32_0 : i32, i32
  }
  func.func @transform_4(%arg0: i32) -> (i32, i32) {
    %c0_i32 = arith.constant 0 : i32
    %c0_i32_0 = arith.constant 0 : i32
    %c0_i32_1 = arith.constant 0 : i32
    return %c0_i32, %c0_i32_0 : i32, i32
  }
  func.func @transform_5(%arg0: i32) -> (i32, i32) {
    %c0_i32 = arith.constant 0 : i32
    %c0_i32_0 = arith.constant 0 : i32
    %c0_i32_1 = arith.constant 0 : i32
    return %c0_i32, %c0_i32_0 : i32, i32
  }
  func.func @transform_6(%arg0: i32) -> (i32, i32) {
    %c0_i32 = arith.constant 0 : i32
    %c0_i32_0 = arith.constant 0 : i32
    %c0_i32_1 = arith.constant 0 : i32
    return %c0_i32, %c0_i32_0 : i32, i32
  }
  func.func @transform_7(%arg0: i32) -> (i32, i32) {
    %c0_i32 = arith.constant 0 : i32
    %c0_i32_0 = arith.constant 0 : i32
    %c0_i32_1 = arith.constant 0 : i32
    return %c0_i32, %c0_i32_0 : i32, i32
  }
  func.func @transform_8(%arg0: i32) -> (i32, i32) {
    %c0_i32 = arith.constant 0 : i32
    %c0_i32_0 = arith.constant 0 : i32
    %c0_i32_1 = arith.constant 0 : i32
    return %c0_i32, %c0_i32_0 : i32, i32
  }
  func.func @transform_9(%arg0: i32) -> (i32, i32) {
    %c0_i32 = arith.constant 0 : i32
    %c0_i32_0 = arith.constant 0 : i32
    %c0_i32_1 = arith.constant 0 : i32
    return %c0_i32, %c0_i32_0 : i32, i32
  }
  func.func @transform_10(%arg0: i32) -> (i32, i32) {
    %c0_i32 = arith.constant 0 : i32
    %c0_i32_0 = arith.constant 0 : i32
    return %arg0, %c0_i32 : i32, i32
  }
}

</mosaic_0001>

<llo_original>
// kernel: tpu_custom_call.1
$region0: #{tpu_custom_call.1}
  #allocation0 [shape = 'u32[]', space=smem, size = 0x4, offset = 0x4, fixed_abs, tag = 'smem constant byte address 0x4 - core index']
  #allocation1 [shape = 'u32[144,128]{1,0:T(1,128)}', space=vmem, size = 0x12000, scoped, tag = 'internal scratch']
  #allocation2 [shape = 'f32[1,1]{1,0:T(1,128)S(1)}', space=vmem, size = 0x200, scoped, tag = 'scoped memory for tpu_custom_call.1']
  %s0 = inlined_call_operand.hbm [shape: f32[8,12], index: 0, kind: input, shape index: {}]
  %s1 = inlined_call_operand.hbm [shape: bf16[8,256], index: 1, kind: input, shape index: {}]
  %s2 = inlined_call_operand.vmem [shape: f32[1,256], index: 2, kind: input, shape index: {}]
  %s3 = inlined_call_operand.hbm [shape: bf16[256,256], index: 3, kind: input, shape index: {}]
  %s4 = inlined_call_operand.vmem [shape: f32[4,256], index: 4, kind: input, shape index: {}]
  %s5 = inlined_call_operand.vmem [shape: f32[1,256], index: 5, kind: input, shape index: {}]
  %s6 = inlined_call_operand.hbm [shape: bf16[256,128], index: 6, kind: input, shape index: {}]
  %s7 = inlined_call_operand.vmem [shape: f32[1,128], index: 7, kind: input, shape index: {}]
  %s8 = inlined_call_operand.vmem [shape: f32[1,128], index: 8, kind: input, shape index: {}]
  %s9 = inlined_call_operand.<no memory space> [shape: f32[1,1], index: 9, kind: input, shape index: {}]
  %s10 = inlined_call_operand.vmem [shape: f32[8,1], index: 10, kind: output, shape index: {}]
  %s11 = sld [smem:[#allocation0]]
  $region66: #{tpu_custom_call.1} parent=0
    _
  %s13 = ssub.s32 1, %s11
  %s14 = scalar_select 0, %s13, %s11
  %v15 = vstv %s9
  %16 = vst [vmem:[#allocation2] sm:$0x1] %v15
  $region1: #{tpu_custom_call.1} parent=0
    #allocation3 [shape = 'u8[4096]{0}', space=vmem, size = 0x1000, scoped, tag = 'input window, operand 0, single buffered']
    #allocation4 [shape = 's32[1]{0}', space=sflag, size = 0x4, scoped, tag = 'scoped memory for tpu_custom_call.1']
    #allocation5 [shape = 'u8[4096]{0}', space=vmem, size = 0x1000, scoped, tag = 'input window, operand 1, single buffered']
    #allocation6 [shape = 's32[1]{0}', space=sflag, size = 0x4, scoped, tag = 'scoped memory for tpu_custom_call.1']
    #allocation7 [shape = 'u8[131072]{0}', space=vmem, size = 0x20000, scoped, tag = 'input window, operand 3, single buffered']
    #allocation8 [shape = 'u8[65536]{0}', space=vmem, size = 0x10000, scoped, tag = 'input window, operand 6, single buffered']
    #allocation9 [shape = 's32[1]{0}', space=sflag, size = 0x4, scoped, tag = 'scoped memory for tpu_custom_call.1']
    %17 = vsyncpa [#allocation4], 0
    %18 = vsyncpa [#allocation6], 0
    %19 = vsyncpa [#allocation9], 0
    // Predicated region
    $region2: #{tpu_custom_call.1} parent=1 // pred_check
      _
    $region3: #{tpu_custom_call.1} parent=1 // pred_check_branch
      %21 = sbr.rel (0) target = $region5
    $region4: #{tpu_custom_call.1} parent=1 // pred_region
      %s23 = ssub.s32 128, 128
      %24 = vsyncadd [#allocation4], %s23
      %s26 = sshll.u32 [#allocation3], 4
      %s27 = int_to_ptr.vmem [resolvable:$true] %s26
      %29 = dma.hbm_to_vmem [thread:$0]  %s0, 128, %s27, [#allocation4]
    $region5: #{tpu_custom_call.1} parent=1 // pred_fallthru
      _
    // Predicated region
    $region6: #{tpu_custom_call.1} parent=1 // pred_check
      _
    $region7: #{tpu_custom_call.1} parent=1 // pred_check_branch
      %31 = sbr.rel (0) target = $region9
    $region8: #{tpu_custom_call.1} parent=1 // pred_region
      %s33 = ssub.s32 128, 128
      %34 = vsyncadd [#allocation6], %s33
      %s36 = sshll.u32 [#allocation5], 4
      %s37 = int_to_ptr.vmem [resolvable:$true] %s36
      %39 = dma.hbm_to_vmem [thread:$0]  %s1, 128, %s37, [#allocation6]
    $region9: #{tpu_custom_call.1} parent=1 // pred_fallthru
      _
    // Predicated region
    $region10: #{tpu_custom_call.1} parent=1 // pred_check
      _
    $region11: #{tpu_custom_call.1} parent=1 // pred_check_branch
      %41 = sbr.rel (0) target = $region13
    $region12: #{tpu_custom_call.1} parent=1 // pred_region
      _
    $region13: #{tpu_custom_call.1} parent=1 // pred_fallthru
      _
    // Predicated region
    $region14: #{tpu_custom_call.1} parent=1 // pred_check
      _
    $region15: #{tpu_custom_call.1} parent=1 // pred_check_branch
      %43 = sbr.rel (0) target = $region17
    $region16: #{tpu_custom_call.1} parent=1 // pred_region
      %s45 = ssub.s32 4096, 4096
      %46 = vsyncadd [#allocation6], %s45
      %s47 = sshll.u32 [#allocation7], 4
      %s48 = int_to_ptr.vmem [resolvable:$true] %s47
      %53 = dma.hbm_to_vmem [thread:$0]  %s3, 4096, %s48, [#allocation6], 128, 128, 8
    $region17: #{tpu_custom_call.1} parent=1 // pred_fallthru
      _
    // Predicated region
    $region18: #{tpu_custom_call.1} parent=1 // pred_check
      _
    $region19: #{tpu_custom_call.1} parent=1 // pred_check_branch
      %55 = sbr.rel (0) target = $region21
    $region20: #{tpu_custom_call.1} parent=1 // pred_region
      _
    $region21: #{tpu_custom_call.1} parent=1 // pred_fallthru
      _
    // Predicated region
    $region22: #{tpu_custom_call.1} parent=1 // pred_check
      _
    $region23: #{tpu_custom_call.1} parent=1 // pred_check_branch
      %57 = sbr.rel (0) target = $region25
    $region24: #{tpu_custom_call.1} parent=1 // pred_region
      _
    $region25: #{tpu_custom_call.1} parent=1 // pred_fallthru
      _
    // Predicated region
    $region26: #{tpu_custom_call.1} parent=1 // pred_check
      _
    $region27: #{tpu_custom_call.1} parent=1 // pred_check_branch
      %59 = sbr.rel (0) target = $region29
    $region28: #{tpu_custom_call.1} parent=1 // pred_region
      %s61 = ssub.s32 2048, 2048
      %62 = vsyncadd [#allocation9], %s61
      %s63 = sshll.u32 [#allocation8], 4
      %s64 = int_to_ptr.vmem [resolvable:$true] %s63
      %69 = dma.hbm_to_vmem [thread:$0]  %s6, 2048, %s64, [#allocation9], 64, 64, 4
    $region29: #{tpu_custom_call.1} parent=1 // pred_fallthru
      _
    // Predicated region
    $region30: #{tpu_custom_call.1} parent=1 // pred_check
      _
    $region31: #{tpu_custom_call.1} parent=1 // pred_check_branch
      %71 = sbr.rel (0) target = $region33
    $region32: #{tpu_custom_call.1} parent=1 // pred_region
      _
    $region33: #{tpu_custom_call.1} parent=1 // pred_fallthru
      _
    // Predicated region
    $region34: #{tpu_custom_call.1} parent=1 // pred_check
      _
    $region35: #{tpu_custom_call.1} parent=1 // pred_check_branch
      %73 = sbr.rel (0) target = $region37
    $region36: #{tpu_custom_call.1} parent=1 // pred_region
      _
    $region37: #{tpu_custom_call.1} parent=1 // pred_fallthru
      _
    // Predicated region
    $region38: #{tpu_custom_call.1} parent=1 // pred_check
      _
    $region39: #{tpu_custom_call.1} parent=1 // pred_check_branch
      %75 = sbr.rel (0) target = $region41
    $region40: #{tpu_custom_call.1} parent=1 // pred_region
      _
    $region41: #{tpu_custom_call.1} parent=1 // pred_fallthru
      _
    // Predicated region
    $region42: #{tpu_custom_call.1} parent=1 // pred_check
      _
    $region43: #{tpu_custom_call.1} parent=1 // pred_check_branch
      %77 = sbr.rel (0) target = $region45
    $region44: #{tpu_custom_call.1} parent=1 // pred_region
      %78 = dma.done [#allocation4], 128
    $region45: #{tpu_custom_call.1} parent=1 // pred_fallthru
      _
    // Predicated region
    $region46: #{tpu_custom_call.1} parent=1 // pred_check
      _
    $region47: #{tpu_custom_call.1} parent=1 // pred_check_branch
      %80 = sbr.rel (0) target = $region49
    $region48: #{tpu_custom_call.1} parent=1 // pred_region
      %81 = dma.done [#allocation6], 128
    $region49: #{tpu_custom_call.1} parent=1 // pred_fallthru
      _
    // Predicated region
    $region50: #{tpu_custom_call.1} parent=1 // pred_check
      _
    $region51: #{tpu_custom_call.1} parent=1 // pred_check_branch
      %83 = sbr.rel (0) target = $region53
    $region52: #{tpu_custom_call.1} parent=1 // pred_region
      %84 = dma.done [#allocation6], 4096
    $region53: #{tpu_custom_call.1} parent=1 // pred_fallthru
      _
    // Predicated region
    $region54: #{tpu_custom_call.1} parent=1 // pred_check
      _
    $region55: #{tpu_custom_call.1} parent=1 // pred_check_branch
      %86 = sbr.rel (0) target = $region57
    $region56: #{tpu_custom_call.1} parent=1 // pred_region
      %87 = dma.done [#allocation9], 2048
    $region57: #{tpu_custom_call.1} parent=1 // pred_fallthru
      _
    %v89 = vld [vmem:[#allocation3] sm:$0xff]
    %v90 = vpack.c.bf16 %v89, %v89
    %v91 = vld [vmem:[#allocation5] sm:$0xff]
    %v92 = vld [vmem:[%s2] sm:$0x3]
    %v94 = vlaneseq
    %v95 = vshrl.u32 %v94, 7
    %v96 = vsub.s32 0, %v95
    %v97 = vrot.slane %v92, %v96
    %v98 = vlaneseq
    %v99 = vshrl.u32 %v98, 7
    %v100 = vsub.s32 1, %v99
    %v101 = vrot.slane %v92, %v100
    %v105 = vunpack.c.l.b16 %v91
    %v106 = vunpack.c.h.b16 %v91
    %v107 = vpack.c.b16 %v105, %v105
    %v108 = vpack.c.b16 %v106, %v106
    %vm109 = vcmask 64512
    %v111 = vsel %vm109, %v90, 0
    %vm113 = vcmask 1043456
    %v115 = vsel %vm113, %v107, 0
    %v118 = vsel %vm113, %v108, 0
    %120 = vmatprep.subr.bf16.mxu0 %v118
    %121 = vmatpush1.bf16.msra.mxu0 %v115
    %122 = vmatprep.subr.bf16.mxu0 0
    %123 = vmatpush1.bf16.msra.mxu0 0
    %124 = vmatprep.subr.bf16.mxu0 0
    %125 = vmatpush1.bf16.msra.mxu0 0
    %126 = vmatprep.subr.bf16.mxu0 0
    %127 = vmatpush1.bf16.msra.mxu0 0
    %128 = vmatprep.subr.bf16.mxu0 0
    %129 = vmatpush1.bf16.msra.mxu0 0
    %130 = vmatprep.subr.bf16.mxu0 0
    %131 = vmatpush1.bf16.msra.mxu0 0
    %132 = vmatprep.subr.bf16.mxu0 0
    %133 = vmatpush1.bf16.msra.mxu0 0
    %134 = vmatprep.subr.bf16.mxu0 0
    %135 = vmatpush1.bf16.msra.mxu0 0
    %136 = vmatprep.subr.bf16.mxu0 0
    %137 = vmatpush1.bf16.msra.mxu0 0
    %138 = vmatprep.subr.bf16.mxu0 0
    %139 = vmatpush1.bf16.msra.mxu0 0
    %140 = vmatprep.subr.bf16.mxu0 0
    %141 = vmatpush1.bf16.msra.mxu0 0
    %142 = vmatprep.subr.bf16.mxu0 0
    %143 = vmatpush1.bf16.msra.mxu0 0
    %144 = vmatprep.subr.bf16.mxu0 0
    %145 = vmatpush1.bf16.msra.mxu0 0
    %146 = vmatprep.subr.bf16.mxu0 0
    %147 = vmatpush1.bf16.msra.mxu0 0
    %148 = vmatprep.subr.bf16.mxu0 0
    %149 = vmatpush1.bf16.msra.mxu0 0
    %150 = vmatprep.subr.bf16.mxu0 0
    %151 = vmatpush1.bf16.msra.mxu0 0
    %152 = vmatprep.mubr.bf16.mxu0 0
    %153 = vmatmul.mubr.bf16.gmra.mrb[0].mxu0 %v111
    %v154 = vpop.f32.mrb[0].mxu0
    %v155 = vadd.f32 %v97, %v154
    %v156 = vpop.f32.mrb[0].mxu0
    %v157 = vadd.f32 %v101, %v156
    %v158 = vpop.f32.mrb[0].mxu0
    %v159 = vpop.f32.mrb[0].mxu0
    %160 = vdwg.mxu0
    %v161 = vmul.f32 %v155, 0.01
    %v162 = vmul.f32 %v157, 0.01
    %v163 = vmax.f32 %v155, %v161
    %v164 = vmax.f32 %v157, %v162
    %v165 = vpack.c.bf16 %v163, %v163
    %v166 = vpack.c.bf16 %v164, %v164
    %v167 = vld [vmem:[#allocation7] sm:$0xff]
    %v168 = vld [vmem:[#allocation7 + $0x8] sm:$0xff]
    %v169 = vld [vmem:[#allocation7 + $0x10] sm:$0xff]
    %v170 = vld [vmem:[#allocation7 + $0x18] sm:$0xff]
    %v171 = vld [vmem:[#allocation7 + $0x20] sm:$0xff]
    %v172 = vld [vmem:[#allocation7 + $0x28] sm:$0xff]
    %v173 = vld [vmem:[#allocation7 + $0x30] sm:$0xff]
    %v174 = vld [vmem:[#allocation7 + $0x38] sm:$0xff]
    %v175 = vld [vmem:[#allocation7 + $0x40] sm:$0xff]
    %v176 = vld [vmem:[#allocation7 + $0x48] sm:$0xff]
    %v177 = vld [vmem:[#allocation7 + $0x50] sm:$0xff]
    %v178 = vld [vmem:[#allocation7 + $0x58] sm:$0xff]
    %v179 = vld [vmem:[#allocation7 + $0x60] sm:$0xff]
    %v180 = vld [vmem:[#allocation7 + $0x68] sm:$0xff]
    %v181 = vld [vmem:[#allocation7 + $0x70] sm:$0xff]
    %v182 = vld [vmem:[#allocation7 + $0x78] sm:$0xff]
    %v183 = vld [vmem:[#allocation7 + $0x80] sm:$0xff]
    %v184 = vld [vmem:[#allocation7 + $0x88] sm:$0xff]
    %v185 = vld [vmem:[#allocation7 + $0x90] sm:$0xff]
    %v186 = vld [vmem:[#allocation7 + $0x98] sm:$0xff]
    %v187 = vld [vmem:[#allocation7 + $0xa0] sm:$0xff]
    %v188 = vld [vmem:[#allocation7 + $0xa8] sm:$0xff]
    %v189 = vld [vmem:[#allocation7 + $0xb0] sm:$0xff]
    %v190 = vld [vmem:[#allocation7 + $0xb8] sm:$0xff]
    %v191 = vld [vmem:[#allocation7 + $0xc0] sm:$0xff]
    %v192 = vld [vmem:[#allocation7 + $0xc8] sm:$0xff]
    %v193 = vld [vmem:[#allocation7 + $0xd0] sm:$0xff]
    %v194 = vld [vmem:[#allocation7 + $0xd8] sm:$0xff]
    %v195 = vld [vmem:[#allocation7 + $0xe0] sm:$0xff]
    %v196 = vld [vmem:[#allocation7 + $0xe8] sm:$0xff]
    %v197 = vld [vmem:[#allocation7 + $0xf0] sm:$0xff]
    %v198 = vld [vmem:[#allocation7 + $0xf8] sm:$0xff]
    %v199 = vld [vmem:[%s5] sm:$0x3]
    %v201 = vlaneseq
    %v202 = vshrl.u32 %v201, 7
    %v203 = vsub.s32 0, %v202
    %v204 = vrot.slane %v199, %v203
    %v205 = vlaneseq
    %v206 = vshrl.u32 %v205, 7
    %v207 = vsub.s32 1, %v206
    %v208 = vrot.slane %v199, %v207
    %v243 = vunpack.c.l.b16 %v167
    %v244 = vunpack.c.h.b16 %v167
    %v245 = vunpack.c.l.b16 %v168
    %v246 = vunpack.c.h.b16 %v168
    %v247 = vunpack.c.l.b16 %v169
    %v248 = vunpack.c.h.b16 %v169
    %v249 = vunpack.c.l.b16 %v170
    %v250 = vunpack.c.h.b16 %v170
    %v251 = vunpack.c.l.b16 %v171
    %v252 = vunpack.c.h.b16 %v171
    %v253 = vunpack.c.l.b16 %v172
    %v254 = vunpack.c.h.b16 %v172
    %v255 = vunpack.c.l.b16 %v173
    %v256 = vunpack.c.h.b16 %v173
    %v257 = vunpack.c.l.b16 %v174
    %v258 = vunpack.c.h.b16 %v174
    %v259 = vunpack.c.l.b16 %v175
    %v260 = vunpack.c.h.b16 %v175
    %v261 = vunpack.c.l.b16 %v176
    %v262 = vunpack.c.h.b16 %v176
    %v263 = vunpack.c.l.b16 %v177
    %v264 = vunpack.c.h.b16 %v177
    %v265 = vunpack.c.l.b16 %v178
    %v266 = vunpack.c.h.b16 %v178
    %v267 = vunpack.c.l.b16 %v179
    %v268 = vunpack.c.h.b16 %v179
    %v269 = vunpack.c.l.b16 %v180
    %v270 = vunpack.c.h.b16 %v180
    %v271 = vunpack.c.l.b16 %v181
    %v272 = vunpack.c.h.b16 %v181
    %v273 = vunpack.c.l.b16 %v182
    %v274 = vunpack.c.h.b16 %v182
    %v275 = vunpack.c.l.b16 %v183
    %v276 = vunpack.c.h.b16 %v183
    %v277 = vunpack.c.l.b16 %v184
    %v278 = vunpack.c.h.b16 %v184
    %v279 = vunpack.c.l.b16 %v185
    %v280 = vunpack.c.h.b16 %v185
    %v281 = vunpack.c.l.b16 %v186
    %v282 = vunpack.c.h.b16 %v186
    %v283 = vunpack.c.l.b16 %v187
    %v284 = vunpack.c.h.b16 %v187
    %v285 = vunpack.c.l.b16 %v188
    %v286 = vunpack.c.h.b16 %v188
    %v287 = vunpack.c.l.b16 %v189
    %v288 = vunpack.c.h.b16 %v189
    %v289 = vunpack.c.l.b16 %v190
    %v290 = vunpack.c.h.b16 %v190
    %v291 = vunpack.c.l.b16 %v191
    %v292 = vunpack.c.h.b16 %v191
    %v293 = vunpack.c.l.b16 %v192
    %v294 = vunpack.c.h.b16 %v192
    %v295 = vunpack.c.l.b16 %v193
    %v296 = vunpack.c.h.b16 %v193
    %v297 = vunpack.c.l.b16 %v194
    %v298 = vunpack.c.h.b16 %v194
    %v299 = vunpack.c.l.b16 %v195
    %v300 = vunpack.c.h.b16 %v195
    %v301 = vunpack.c.l.b16 %v196
    %v302 = vunpack.c.h.b16 %v196
    %v303 = vunpack.c.l.b16 %v197
    %v304 = vunpack.c.h.b16 %v197
    %v305 = vunpack.c.l.b16 %v198
    %v306 = vunpack.c.h.b16 %v198
    %v307 = vpack.c.b16 %v245, %v243
    %v308 = vpack.c.b16 %v246, %v244
    %v309 = vpack.c.b16 %v249, %v247
    %v310 = vpack.c.b16 %v250, %v248
    %v311 = vpack.c.b16 %v253, %v251
    %v312 = vpack.c.b16 %v254, %v252
    %v313 = vpack.c.b16 %v257, %v255
    %v314 = vpack.c.b16 %v258, %v256
    %v315 = vpack.c.b16 %v261, %v259
    %v316 = vpack.c.b16 %v262, %v260
    %v317 = vpack.c.b16 %v265, %v263
    %v318 = vpack.c.b16 %v266, %v264
    %v319 = vpack.c.b16 %v269, %v267
    %v320 = vpack.c.b16 %v270, %v268
    %v321 = vpack.c.b16 %v273, %v271
    %v322 = vpack.c.b16 %v274, %v272
    %v323 = vpack.c.b16 %v277, %v275
    %v324 = vpack.c.b16 %v278, %v276
    %v325 = vpack.c.b16 %v281, %v279
    %v326 = vpack.c.b16 %v282, %v280
    %v327 = vpack.c.b16 %v285, %v283
    %v328 = vpack.c.b16 %v286, %v284
    %v329 = vpack.c.b16 %v289, %v287
    %v330 = vpack.c.b16 %v290, %v288
    %v331 = vpack.c.b16 %v293, %v291
    %v332 = vpack.c.b16 %v294, %v292
    %v333 = vpack.c.b16 %v297, %v295
    %v334 = vpack.c.b16 %v298, %v296
    %v335 = vpack.c.b16 %v301, %v299
    %v336 = vpack.c.b16 %v302, %v300
    %v337 = vpack.c.b16 %v305, %v303
    %v338 = vpack.c.b16 %v306, %v304
    %371 = vmatprep.subr.bf16.mxu0 %v308
    %372 = vmatpush1.bf16.msra.mxu0 %v307
    %373 = vmatprep.subr.bf16.mxu0 %v310
    %374 = vmatpush1.bf16.msra.mxu0 %v309
    %375 = vmatprep.subr.bf16.mxu0 %v312
    %376 = vmatpush1.bf16.msra.mxu0 %v311
    %377 = vmatprep.subr.bf16.mxu0 %v314
    %378 = vmatpush1.bf16.msra.mxu0 %v313
    %379 = vmatprep.subr.bf16.mxu0 %v316
    %380 = vmatpush1.bf16.msra.mxu0 %v315
    %381 = vmatprep.subr.bf16.mxu0 %v318
    %382 = vmatpush1.bf16.msra.mxu0 %v317
    %383 = vmatprep.subr.bf16.mxu0 %v320
    %384 = vmatpush1.bf16.msra.mxu0 %v319
    %385 = vmatprep.subr.bf16.mxu0 %v322
    %386 = vmatpush1.bf16.msra.mxu0 %v321
    %387 = vmatprep.subr.bf16.mxu0 %v324
    %388 = vmatpush1.bf16.msra.mxu0 %v323
    %389 = vmatprep.subr.bf16.mxu0 %v326
    %390 = vmatpush1.bf16.msra.mxu0 %v325
    %391 = vmatprep.subr.bf16.mxu0 %v328
    %392 = vmatpush1.bf16.msra.mxu0 %v327
    %393 = vmatprep.subr.bf16.mxu0 %v330
    %394 = vmatpush1.bf16.msra.mxu0 %v329
    %395 = vmatprep.subr.bf16.mxu0 %v332
    %396 = vmatpush1.bf16.msra.mxu0 %v331
    %397 = vmatprep.subr.bf16.mxu0 %v334
    %398 = vmatpush1.bf16.msra.mxu0 %v333
    %399 = vmatprep.subr.bf16.mxu0 %v336
    %400 = vmatpush1.bf16.msra.mxu0 %v335
    %401 = vmatprep.subr.bf16.mxu0 %v338
    %402 = vmatpush1.bf16.msra.mxu0 %v337
    %403 = vmatprep.mubr.bf16.mxu0 %v166
    %404 = vmatmul.mubr.bf16.gmra.mrb[0].mxu0 %v165
    %v405 = vpop.f32.mrb[0].mxu0
    %v406 = vadd.f32 %v204, %v405
    %v407 = vpop.f32.mrb[0].mxu0
    %v408 = vadd.f32 %v208, %v407
    %v409 = vpop.f32.mrb[0].mxu0
    %v410 = vpop.f32.mrb[0].mxu0
    %411 = vdwg.mxu0
    %v412 = vld [vmem:[%s4] sm:$0xff]
    %414 = vset.pattern.permute.xlu0 8
    %415 = vperm.xlu0 %414, %v89
    %v416 = vpop.permute.xlu0 %415
    %v419 = vlaneseq
    %v420 = vshrl.u32 %v419, 7
    %v421 = vsub.s32 0, %v420
    %v422 = vrot.slane %v412, %v421
    %v423 = vlaneseq
    %v424 = vshrl.u32 %v423, 7
    %v425 = vsub.s32 4, %v424
    %v426 = vrot.slane %v412, %v425
    %v429 = vlaneseq
    %v430 = vshrl.u32 %v429, 7
    %v431 = vsub.s32 0, %v430
    %v432 = vrot.slane %v422, %v431
    %v433 = vlaneseq
    %v434 = vshrl.u32 %v433, 7
    %v435 = vsub.s32 0, %v434
    %v436 = vrot.slane %v426, %v435
    %v437 = vmul.f32 %v416, %v432
    %v438 = vmul.f32 %v416, %v436
    %v439 = vadd.f32 %v406, %v437
    %v440 = vadd.f32 %v408, %v438
    %441 = vset.pattern.permute.xlu0 9
    %442 = vperm.xlu0 %441, %v89
    %v443 = vpop.permute.xlu0 %442
    %v445 = vlaneseq
    %v446 = vshrl.u32 %v445, 7
    %v447 = vsub.s32 1, %v446
    %v448 = vrot.slane %v412, %v447
    %v449 = vlaneseq
    %v450 = vshrl.u32 %v449, 7
    %v451 = vsub.s32 5, %v450
    %v452 = vrot.slane %v412, %v451
    %v455 = vlaneseq
    %v456 = vshrl.u32 %v455, 7
    %v457 = vsub.s32 1, %v456
    %v458 = vrot.slane %v448, %v457
    %v459 = vlaneseq
    %v460 = vshrl.u32 %v459, 7
    %v461 = vsub.s32 1, %v460
    %v462 = vrot.slane %v452, %v461
    %v463 = vmul.f32 %v443, %v458
    %v464 = vmul.f32 %v443, %v462
    %v465 = vadd.f32 %v439, %v463
    %v466 = vadd.f32 %v440, %v464
    %467 = vset.pattern.permute.xlu0 10
    %468 = vperm.xlu0 %467, %v89
    %v469 = vpop.permute.xlu0 %468
    %v471 = vlaneseq
    %v472 = vshrl.u32 %v471, 7
    %v473 = vsub.s32 2, %v472
    %v474 = vrot.slane %v412, %v473
    %v475 = vlaneseq
    %v476 = vshrl.u32 %v475, 7
    %v477 = vsub.s32 6, %v476
    %v478 = vrot.slane %v412, %v477
    %v481 = vlaneseq
    %v482 = vshrl.u32 %v481, 7
    %v483 = vsub.s32 2, %v482
    %v484 = vrot.slane %v474, %v483
    %v485 = vlaneseq
    %v486 = vshrl.u32 %v485, 7
    %v487 = vsub.s32 2, %v486
    %v488 = vrot.slane %v478, %v487
    %v489 = vmul.f32 %v469, %v484
    %v490 = vmul.f32 %v469, %v488
    %v491 = vadd.f32 %v465, %v489
    %v492 = vadd.f32 %v466, %v490
    %493 = vset.pattern.permute.xlu0 11
    %494 = vperm.xlu0 %493, %v89
    %v495 = vpop.permute.xlu0 %494
    %v497 = vlaneseq
    %v498 = vshrl.u32 %v497, 7
    %v499 = vsub.s32 3, %v498
    %v500 = vrot.slane %v412, %v499
    %v501 = vlaneseq
    %v502 = vshrl.u32 %v501, 7
    %v503 = vsub.s32 7, %v502
    %v504 = vrot.slane %v412, %v503
    %v507 = vlaneseq
    %v508 = vshrl.u32 %v507, 7
    %v509 = vsub.s32 3, %v508
    %v510 = vrot.slane %v500, %v509
    %v511 = vlaneseq
    %v512 = vshrl.u32 %v511, 7
    %v513 = vsub.s32 3, %v512
    %v514 = vrot.slane %v504, %v513
    %v515 = vmul.f32 %v495, %v510
    %v516 = vmul.f32 %v495, %v514
    %v517 = vadd.f32 %v491, %v515
    %v518 = vadd.f32 %v492, %v516
    %v519 = vmul.f32 %v517, 0.01
    %v520 = vmul.f32 %v518, 0.01
    %v521 = vmax.f32 %v517, %v519
    %v522 = vmax.f32 %v518, %v520
    %v523 = vpack.c.bf16 %v521, %v521
    %v524 = vpack.c.bf16 %v522, %v522
    %v525 = vld [vmem:[#allocation8] sm:$0xf]
    %v526 = vld [vmem:[#allocation8 + $0x4] sm:$0xf]
    %v527 = vld [vmem:[#allocation8 + $0x8] sm:$0xf]
    %v528 = vld [vmem:[#allocation8 + $0xc] sm:$0xf]
    %v529 = vld [vmem:[#allocation8 + $0x10] sm:$0xf]
    %v530 = vld [vmem:[#allocation8 + $0x14] sm:$0xf]
    %v531 = vld [vmem:[#allocation8 + $0x18] sm:$0xf]
    %v532 = vld [vmem:[#allocation8 + $0x1c] sm:$0xf]
    %v533 = vld [vmem:[#allocation8 + $0x20] sm:$0xf]
    %v534 = vld [vmem:[#allocation8 + $0x24] sm:$0xf]
    %v535 = vld [vmem:[#allocation8 + $0x28] sm:$0xf]
    %v536 = vld [vmem:[#allocation8 + $0x2c] sm:$0xf]
    %v537 = vld [vmem:[#allocation8 + $0x30] sm:$0xf]
    %v538 = vld [vmem:[#allocation8 + $0x34] sm:$0xf]
    %v539 = vld [vmem:[#allocation8 + $0x38] sm:$0xf]
    %v540 = vld [vmem:[#allocation8 + $0x3c] sm:$0xf]
    %v541 = vld [vmem:[#allocation8 + $0x40] sm:$0xf]
    %v542 = vld [vmem:[#allocation8 + $0x44] sm:$0xf]
    %v543 = vld [vmem:[#allocation8 + $0x48] sm:$0xf]
    %v544 = vld [vmem:[#allocation8 + $0x4c] sm:$0xf]
    %v545 = vld [vmem:[#allocation8 + $0x50] sm:$0xf]
    %v546 = vld [vmem:[#allocation8 + $0x54] sm:$0xf]
    %v547 = vld [vmem:[#allocation8 + $0x58] sm:$0xf]
    %v548 = vld [vmem:[#allocation8 + $0x5c] sm:$0xf]
    %v549 = vld [vmem:[#allocation8 + $0x60] sm:$0xf]
    %v550 = vld [vmem:[#allocation8 + $0x64] sm:$0xf]
    %v551 = vld [vmem:[#allocation8 + $0x68] sm:$0xf]
    %v552 = vld [vmem:[#allocation8 + $0x6c] sm:$0xf]
    %v553 = vld [vmem:[#allocation8 + $0x70] sm:$0xf]
    %v554 = vld [vmem:[#allocation8 + $0x74] sm:$0xf]
    %v555 = vld [vmem:[#allocation8 + $0x78] sm:$0xf]
    %v556 = vld [vmem:[#allocation8 + $0x7c] sm:$0xf]
    %v557 = vld [vmem:[%s7] sm:$0x1]
    %v559 = vlaneseq
    %v560 = vshrl.u32 %v559, 7
    %v561 = vsub.s32 0, %v560
    %v562 = vrot.slane %v557, %v561
    %v596 = vunpack.c.l.b16 %v525
    %v597 = vunpack.c.l.b16 %v526
    %v598 = vunpack.c.l.b16 %v527
    %v599 = vunpack.c.l.b16 %v528
    %v600 = vunpack.c.l.b16 %v529
    %v601 = vunpack.c.l.b16 %v530
    %v602 = vunpack.c.l.b16 %v531
    %v603 = vunpack.c.l.b16 %v532
    %v604 = vunpack.c.l.b16 %v533
    %v605 = vunpack.c.l.b16 %v534
    %v606 = vunpack.c.l.b16 %v535
    %v607 = vunpack.c.l.b16 %v536
    %v608 = vunpack.c.l.b16 %v537
    %v609 = vunpack.c.l.b16 %v538
    %v610 = vunpack.c.l.b16 %v539
    %v611 = vunpack.c.l.b16 %v540
    %v612 = vunpack.c.l.b16 %v541
    %v613 = vunpack.c.l.b16 %v542
    %v614 = vunpack.c.l.b16 %v543
    %v615 = vunpack.c.l.b16 %v544
    %v616 = vunpack.c.l.b16 %v545
    %v617 = vunpack.c.l.b16 %v546
    %v618 = vunpack.c.l.b16 %v547
    %v619 = vunpack.c.l.b16 %v548
    %v620 = vunpack.c.l.b16 %v549
    %v621 = vunpack.c.l.b16 %v550
    %v622 = vunpack.c.l.b16 %v551
    %v623 = vunpack.c.l.b16 %v552
    %v624 = vunpack.c.l.b16 %v553
    %v625 = vunpack.c.l.b16 %v554
    %v626 = vunpack.c.l.b16 %v555
    %v627 = vunpack.c.l.b16 %v556
    %v628 = vpack.c.b16 %v597, %v596
    %v629 = vpack.c.b16 %v599, %v598
    %v630 = vpack.c.b16 %v601, %v600
    %v631 = vpack.c.b16 %v603, %v602
    %v632 = vpack.c.b16 %v605, %v604
    %v633 = vpack.c.b16 %v607, %v606
    %v634 = vpack.c.b16 %v609, %v608
    %v635 = vpack.c.b16 %v611, %v610
    %v636 = vpack.c.b16 %v613, %v612
    %v637 = vpack.c.b16 %v615, %v614
    %v638 = vpack.c.b16 %v617, %v616
    %v639 = vpack.c.b16 %v619, %v618
    %v640 = vpack.c.b16 %v621, %v620
    %v641 = vpack.c.b16 %v623, %v622
    %v642 = vpack.c.b16 %v625, %v624
    %v643 = vpack.c.b16 %v627, %v626
    %660 = vmatprep.subr.bf16.mxu0 0
    %661 = vmatpush1.bf16.msra.mxu0 %v628
    %662 = vmatprep.subr.bf16.mxu0 0
    %663 = vmatpush1.bf16.msra.mxu0 %v629
    %664 = vmatprep.subr.bf16.mxu0 0
    %665 = vmatpush1.bf16.msra.mxu0 %v630
    %666 = vmatprep.subr.bf16.mxu0 0
    %667 = vmatpush1.bf16.msra.mxu0 %v631
    %668 = vmatprep.subr.bf16.mxu0 0
    %669 = vmatpush1.bf16.msra.mxu0 %v632
    %670 = vmatprep.subr.bf16.mxu0 0
    %671 = vmatpush1.bf16.msra.mxu0 %v633
    %672 = vmatprep.subr.bf16.mxu0 0
    %673 = vmatpush1.bf16.msra.mxu0 %v634
    %674 = vmatprep.subr.bf16.mxu0 0
    %675 = vmatpush1.bf16.msra.mxu0 %v635
    %676 = vmatprep.subr.bf16.mxu0 0
    %677 = vmatpush1.bf16.msra.mxu0 %v636
    %678 = vmatprep.subr.bf16.mxu0 0
    %679 = vmatpush1.bf16.msra.mxu0 %v637
    %680 = vmatprep.subr.bf16.mxu0 0
    %681 = vmatpush1.bf16.msra.mxu0 %v638
    %682 = vmatprep.subr.bf16.mxu0 0
    %683 = vmatpush1.bf16.msra.mxu0 %v639
    %684 = vmatprep.subr.bf16.mxu0 0
    %685 = vmatpush1.bf16.msra.mxu0 %v640
    %686 = vmatprep.subr.bf16.mxu0 0
    %687 = vmatpush1.bf16.msra.mxu0 %v641
    %688 = vmatprep.subr.bf16.mxu0 0
    %689 = vmatpush1.bf16.msra.mxu0 %v642
    %690 = vmatprep.subr.bf16.mxu0 0
    %691 = vmatpush1.bf16.msra.mxu0 %v643
    %692 = vmatprep.mubr.bf16.mxu0 %v524
    %693 = vmatmul.mubr.bf16.gmra.mrb[0].mxu0 %v523
    %v694 = vpop.f32.mrb[0].mxu0
    %v695 = vadd.f32 %v562, %v694
    %v696 = vpop.f32.mrb[0].mxu0
    %v697 = vpop.f32.mrb[0].mxu0
    %v698 = vpop.f32.mrb[0].mxu0
    %699 = vdwg.mxu0
    %v700 = vmul.f32 %v695, 0.01
    %v701 = vmax.f32 %v695, %v700
    %v702 = vld [vmem:[%s8] sm:$0x1]
    %v704 = vlaneseq
    %v705 = vshrl.u32 %v704, 7
    %v706 = vsub.s32 0, %v705
    %v707 = vrot.slane %v702, %v706
    %v709 = vmul.f32 %v701, %v707
    %710 = vadd.xlane.f32.xlu0 %v709
    %v711 = vpop.xlane.xlu0 %710
    %v712 = vld [vmem:[#allocation2] sm:$0x1]
    %v714 = vlaneseq
    %v715 = vshrl.u32 %v714, 7
    %v716 = vsub.s32 0, %v715
    %v717 = vrot.slane %v712, %v716
    %v719 = vadd.f32 %v711, %v717
    %vm720 = vcmask 7168
    %721 = vst.msk [vmem:[%s10] sm:$0xff] %vm720, %v719
    // Predicated region
    $region58: #{tpu_custom_call.1} parent=1 // pred_check
      _
    $region59: #{tpu_custom_call.1} parent=1 // pred_check_branch
      %723 = sbr.rel (0) target = $region61
    $region60: #{tpu_custom_call.1} parent=1 // pred_region
      _
    $region61: #{tpu_custom_call.1} parent=1 // pred_fallthru
      _
    // Predicated region
    $region62: #{tpu_custom_call.1} parent=1 // pred_check
      _
    $region63: #{tpu_custom_call.1} parent=1 // pred_check_branch
      %725 = sbr.rel (0) target = $region65
    $region64: #{tpu_custom_call.1} parent=1 // pred_region
      _
    $region65: #{tpu_custom_call.1} parent=1 // pred_fallthru
      _
    %726 = vsyncpa [#allocation4], 1
    %727 = vsyncpa [#allocation6], 1
    %728 = vsyncpa [#allocation9], 1

</llo_original>
